<compile_context>
chip_gen: v5e
topology: v5e:2x2
jax: 0.10.0
libtpu: 0.0.40
codegen_flags: <defaults>
</compile_context>

<pallas_src>
import jax
import jax.numpy as jnp
from jax.experimental import pallas as pl
from jax.experimental.pallas import tpu as pltpu

X_FEATURES = 6                      # features contributed by x
Y_FEATURES = 6                      # features contributed by y
INPUT_SIZE = X_FEATURES + Y_FEATURES   # 12 (the "virtual" concat width)
MID_DIM = 7
OUTPUT_SIZE = 2


def two_layer_fc_kernel(xt_ref, yt_ref, w1x_ref, w1y_ref, b1_ref,
                        w2_ref, b2_ref, ot_ref):
    # xt_ref : (X_FEATURES, TB)    activations, batch on lanes
    # yt_ref : (Y_FEATURES, TB)
    # w1x_ref: (MID_DIM, X_FEATURES)   = W1[:, :6]  (PyTorch (out, in) layout)
    # w1y_ref: (MID_DIM, Y_FEATURES)   = W1[:, 6:]
    # b1_ref : (MID_DIM, 1)
    # w2_ref : (OUTPUT_SIZE, MID_DIM)
    # b2_ref : (OUTPUT_SIZE, 1)
    # ot_ref : (OUTPUT_SIZE, TB)
    xt = xt_ref[...]
    yt = yt_ref[...]
    w1x = w1x_ref[...]
    w1y = w1y_ref[...]
    w2 = w2_ref[...]
    tb = xt.shape[-1]

    # Layer 1: h = W1 @ [x; y]^T + b1, then ReLU.  Contraction depth is only
    # 12, far too skinny for the MXU -> unrolled broadcast-FMAs on the VPU,
    # with the bias as the accumulator init (fused epilogue/prologue).
    h = jnp.broadcast_to(b1_ref[...], (MID_DIM, tb))
    for k in range(X_FEATURES):
        h = h + w1x[:, k:k + 1] * xt[k:k + 1, :]
    for k in range(Y_FEATURES):
        h = h + w1y[:, k:k + 1] * yt[k:k + 1, :]
    h = jnp.maximum(h, 0.0)

    # Layer 2: out = W2 @ h + b2  (7-deep contraction, same VPU FMA scheme).
    out = jnp.broadcast_to(b2_ref[...], (OUTPUT_SIZE, tb))
    for m in range(MID_DIM):
        out = out + w2[:, m:m + 1] * h[m:m + 1, :]

    # (2, TB) slab: full-width lane-dense store (no masked vst.msk).
    ot_ref[...] = out.astype(ot_ref.dtype)


def two_layer_fc_t(xt, yt, w1, b1, w2, b2, *, batch_tile=512):
    """Fast path: activations already carried transposed.

    xt: (X_FEATURES, B), yt: (Y_FEATURES, B)  ->  (OUTPUT_SIZE, B)
    w1: (MID_DIM, INPUT_SIZE), b1: (MID_DIM,), w2: (OUTPUT_SIZE, MID_DIM), b2: (OUTPUT_SIZE,)
    """
    dx, B = xt.shape
    dy = yt.shape[0]
    assert dx + dy == w1.shape[1]

    # Split W1 into the x- and y-feeding halves (tiny; in a real pipeline these
    # would be pre-split parameters) -- no input concat anywhere.
    w1x = w1[:, :dx]
    w1y = w1[:, dx:]
    b1c = b1.reshape(MID_DIM, 1)
    b2c = b2.reshape(OUTPUT_SIZE, 1)

    # Batch tile: the lane dim of each block must be a multiple of 128 or the
    # full batch.  Small tiles keep double-buffered VMEM use tiny (well under
    # the v7x 64 MiB / default 32 MiB scoped limits).
    tb = B if B < batch_tile else batch_tile
    grid = (pl.cdiv(B, tb),)

    return pl.pallas_call(
        two_layer_fc_kernel,
        out_shape=jax.ShapeDtypeStruct((OUTPUT_SIZE, B), jnp.float32),
        grid=grid,
        in_specs=[
            pl.BlockSpec((dx, tb), lambda i: (0, i)),           # x^T, batch-tiled
            pl.BlockSpec((dy, tb), lambda i: (0, i)),           # y^T, batch-tiled
            pl.BlockSpec((MID_DIM, dx), lambda i: (0, 0)),      # weights/biases stay
            pl.BlockSpec((MID_DIM, dy), lambda i: (0, 0)),      # VMEM-resident across
            pl.BlockSpec((MID_DIM, 1), lambda i: (0, 0)),       # all batch tiles
            pl.BlockSpec((OUTPUT_SIZE, MID_DIM), lambda i: (0, 0)),
            pl.BlockSpec((OUTPUT_SIZE, 1), lambda i: (0, 0)),
        ],
        out_specs=pl.BlockSpec((OUTPUT_SIZE, tb), lambda i: (0, i)),
        compiler_params=pltpu.CompilerParams(
            # Batch tiles are independent -> pipelined and shardable across
            # the two TensorCores on v7x.
            dimension_semantics=("parallel",),
        ),
    )(xt, yt, w1x, w1y, b1c, w2, b2c)


def two_layer_fc(x, y, w1, b1, w2, b2, *, batch_tile=512):
    """PyTorch-compatible wrapper: x (B, 6), y (B, 6) -> (B, 2).

    The transposes here are pure layout plumbing to present lane-dense slabs
    to the kernel; callers that already carry (features, batch) activations
    should use two_layer_fc_t directly and skip them.
    """
    out_t = two_layer_fc_t(x.T, y.T, w1, b1, w2, b2, batch_tile=batch_tile)
    return out_t.T


def init_params(key):
    # Deterministic init mimicking nn.Linear's U(-1/sqrt(fan_in), 1/sqrt(fan_in)),
    # with weights in PyTorch-native (out_features, in_features) orientation.
    k1, k2, k3, k4 = jax.random.split(key, 4)
    lim1 = 1.0 / jnp.sqrt(INPUT_SIZE)
    lim2 = 1.0 / jnp.sqrt(MID_DIM)
    w1 = jax.random.uniform(k1, (MID_DIM, INPUT_SIZE), jnp.float32, -lim1, lim1)
    b1 = jax.random.uniform(k2, (MID_DIM,), jnp.float32, -lim1, lim1)
    w2 = jax.random.uniform(k3, (OUTPUT_SIZE, MID_DIM), jnp.float32, -lim2, lim2)
    b2 = jax.random.uniform(k4, (OUTPUT_SIZE,), jnp.float32, -lim2, lim2)
    return w1, b1, w2, b2


if __name__ == "__main__":
    key = jax.random.PRNGKey(0)
    kx, ky, kp = jax.random.split(key, 3)

    B = 256   # two 128-wide batch tiles -> exercises the tiled, parallel grid
    x = jax.random.normal(kx, (B, X_FEATURES), jnp.float32)
    y = jax.random.normal(ky, (B, Y_FEATURES), jnp.float32)
    w1, b1, w2, b2 = init_params(kp)

    out = two_layer_fc(x, y, w1, b1, w2, b2, batch_tile=128)
    out = jax.block_until_ready(out)

    # Pure-JAX reference (PyTorch semantics: Linear does x @ W^T + b).
    c = jnp.concatenate([x, y], axis=1)
    ref = jnp.maximum(c @ w1.T + b1, 0.0) @ w2.T + b2
    assert out.shape == (B, OUTPUT_SIZE)
    assert jnp.allclose(out, ref, atol=1e-5, rtol=1e-5)

    print("KERNEL_OK")
</pallas_src>

<mosaic_0001>
module attributes {stable_mosaic.version = 11 : i64} {
  func.func @two_layer_fc_kernel(%arg0: i32, %arg1: memref<6x128xf32, #tpu.memory_space<vmem>>, %arg2: memref<6x128xf32, #tpu.memory_space<vmem>>, %arg3: memref<7x6xf32, #tpu.memory_space<vmem>>, %arg4: memref<7x6xf32, #tpu.memory_space<vmem>>, %arg5: memref<7x1xf32, #tpu.memory_space<vmem>>, %arg6: memref<2x7xf32, #tpu.memory_space<vmem>>, %arg7: memref<2x1xf32, #tpu.memory_space<vmem>>, %arg8: memref<2x128xf32, #tpu.memory_space<vmem>>) attributes {dimension_semantics = [#tpu.dimension_semantics<parallel>], iteration_bounds = array<i64: 2>, scalar_prefetch = 0 : i64, scratch_operands = 0 : i64, tpu.core_type = #tpu.core_type<tc>, window_params = [{transform_indices = @transform_0, window_bounds = array<i64: 6, 128>}, {transform_indices = @transform_1, window_bounds = array<i64: 6, 128>}, {pipeline_mode = #tpu.pipeline_mode<synchronous>, transform_indices = @transform_2, window_bounds = array<i64: 7, 6>}, {pipeline_mode = #tpu.pipeline_mode<synchronous>, transform_indices = @transform_3, window_bounds = array<i64: 7, 6>}, {pipeline_mode = #tpu.pipeline_mode<synchronous>, transform_indices = @transform_4, window_bounds = array<i64: 7, 1>}, {pipeline_mode = #tpu.pipeline_mode<synchronous>, transform_indices = @transform_5, window_bounds = array<i64: 2, 7>}, {pipeline_mode = #tpu.pipeline_mode<synchronous>, transform_indices = @transform_6, window_bounds = array<i64: 2, 1>}, {transform_indices = @transform_7, window_bounds = array<i64: 2, 128>}]} {
    %c0 = arith.constant 0 : index
    %c0_0 = arith.constant 0 : index
    %0 = vector.load %arg1[%c0, %c0_0] : memref<6x128xf32, #tpu.memory_space<vmem>>, vector<6x128xf32>
    %c0_1 = arith.constant 0 : index
    %c0_2 = arith.constant 0 : index
    %1 = vector.load %arg2[%c0_1, %c0_2] : memref<6x128xf32, #tpu.memory_space<vmem>>, vector<6x128xf32>
    %c0_3 = arith.constant 0 : index
    %c0_4 = arith.constant 0 : index
    %2 = vector.load %arg3[%c0_3, %c0_4] : memref<7x6xf32, #tpu.memory_space<vmem>>, vector<7x6xf32>
    %c0_5 = arith.constant 0 : index
    %c0_6 = arith.constant 0 : index
    %3 = vector.load %arg4[%c0_5, %c0_6] : memref<7x6xf32, #tpu.memory_space<vmem>>, vector<7x6xf32>
    %c0_7 = arith.constant 0 : index
    %c0_8 = arith.constant 0 : index
    %4 = vector.load %arg6[%c0_7, %c0_8] : memref<2x7xf32, #tpu.memory_space<vmem>>, vector<2x7xf32>
    %c0_9 = arith.constant 0 : index
    %c0_10 = arith.constant 0 : index
    %5 = vector.load %arg5[%c0_9, %c0_10] : memref<7x1xf32, #tpu.memory_space<vmem>>, vector<7x1xf32>
    %6 = vector.shape_cast %5 : vector<7x1xf32> to vector<7x1xf32>
    %7 = vector.broadcast %6 : vector<7x1xf32> to vector<7x128xf32>
    %8 = vector.extract_strided_slice %2 {offsets = [0, 0], sizes = [7, 1], strides = [1, 1]} : vector<7x6xf32> to vector<7x1xf32>
    %9 = vector.extract_strided_slice %0 {offsets = [0, 0], sizes = [1, 128], strides = [1, 1]} : vector<6x128xf32> to vector<1x128xf32>
    %10 = vector.broadcast %8 : vector<7x1xf32> to vector<7x128xf32>
    %11 = vector.broadcast %9 : vector<1x128xf32> to vector<7x128xf32>
    %12 = arith.mulf %10, %11 : vector<7x128xf32>
    %13 = arith.addf %7, %12 : vector<7x128xf32>
    %14 = vector.extract_strided_slice %2 {offsets = [0, 1], sizes = [7, 1], strides = [1, 1]} : vector<7x6xf32> to vector<7x1xf32>
    %15 = vector.extract_strided_slice %0 {offsets = [1, 0], sizes = [1, 128], strides = [1, 1]} : vector<6x128xf32> to vector<1x128xf32>
    %16 = vector.broadcast %14 : vector<7x1xf32> to vector<7x128xf32>
    %17 = vector.broadcast %15 : vector<1x128xf32> to vector<7x128xf32>
    %18 = arith.mulf %16, %17 : vector<7x128xf32>
    %19 = arith.addf %13, %18 : vector<7x128xf32>
    %20 = vector.extract_strided_slice %2 {offsets = [0, 2], sizes = [7, 1], strides = [1, 1]} : vector<7x6xf32> to vector<7x1xf32>
    %21 = vector.extract_strided_slice %0 {offsets = [2, 0], sizes = [1, 128], strides = [1, 1]} : vector<6x128xf32> to vector<1x128xf32>
    %22 = vector.broadcast %20 : vector<7x1xf32> to vector<7x128xf32>
    %23 = vector.broadcast %21 : vector<1x128xf32> to vector<7x128xf32>
    %24 = arith.mulf %22, %23 : vector<7x128xf32>
    %25 = arith.addf %19, %24 : vector<7x128xf32>
    %26 = vector.extract_strided_slice %2 {offsets = [0, 3], sizes = [7, 1], strides = [1, 1]} : vector<7x6xf32> to vector<7x1xf32>
    %27 = vector.extract_strided_slice %0 {offsets = [3, 0], sizes = [1, 128], strides = [1, 1]} : vector<6x128xf32> to vector<1x128xf32>
    %28 = vector.broadcast %26 : vector<7x1xf32> to vector<7x128xf32>
    %29 = vector.broadcast %27 : vector<1x128xf32> to vector<7x128xf32>
    %30 = arith.mulf %28, %29 : vector<7x128xf32>
    %31 = arith.addf %25, %30 : vector<7x128xf32>
    %32 = vector.extract_strided_slice %2 {offsets = [0, 4], sizes = [7, 1], strides = [1, 1]} : vector<7x6xf32> to vector<7x1xf32>
    %33 = vector.extract_strided_slice %0 {offsets = [4, 0], sizes = [1, 128], strides = [1, 1]} : vector<6x128xf32> to vector<1x128xf32>
    %34 = vector.broadcast %32 : vector<7x1xf32> to vector<7x128xf32>
    %35 = vector.broadcast %33 : vector<1x128xf32> to vector<7x128xf32>
    %36 = arith.mulf %34, %35 : vector<7x128xf32>
    %37 = arith.addf %31, %36 : vector<7x128xf32>
    %38 = vector.extract_strided_slice %2 {offsets = [0, 5], sizes = [7, 1], strides = [1, 1]} : vector<7x6xf32> to vector<7x1xf32>
    %39 = vector.extract_strided_slice %0 {offsets = [5, 0], sizes = [1, 128], strides = [1, 1]} : vector<6x128xf32> to vector<1x128xf32>
    %40 = vector.broadcast %38 : vector<7x1xf32> to vector<7x128xf32>
    %41 = vector.broadcast %39 : vector<1x128xf32> to vector<7x128xf32>
    %42 = arith.mulf %40, %41 : vector<7x128xf32>
    %43 = arith.addf %37, %42 : vector<7x128xf32>
    %44 = vector.extract_strided_slice %3 {offsets = [0, 0], sizes = [7, 1], strides = [1, 1]} : vector<7x6xf32> to vector<7x1xf32>
    %45 = vector.extract_strided_slice %1 {offsets = [0, 0], sizes = [1, 128], strides = [1, 1]} : vector<6x128xf32> to vector<1x128xf32>
    %46 = vector.broadcast %44 : vector<7x1xf32> to vector<7x128xf32>
    %47 = vector.broadcast %45 : vector<1x128xf32> to vector<7x128xf32>
    %48 = arith.mulf %46, %47 : vector<7x128xf32>
    %49 = arith.addf %43, %48 : vector<7x128xf32>
    %50 = vector.extract_strided_slice %3 {offsets = [0, 1], sizes = [7, 1], strides = [1, 1]} : vector<7x6xf32> to vector<7x1xf32>
    %51 = vector.extract_strided_slice %1 {offsets = [1, 0], sizes = [1, 128], strides = [1, 1]} : vector<6x128xf32> to vector<1x128xf32>
    %52 = vector.broadcast %50 : vector<7x1xf32> to vector<7x128xf32>
    %53 = vector.broadcast %51 : vector<1x128xf32> to vector<7x128xf32>
    %54 = arith.mulf %52, %53 : vector<7x128xf32>
    %55 = arith.addf %49, %54 : vector<7x128xf32>
    %56 = vector.extract_strided_slice %3 {offsets = [0, 2], sizes = [7, 1], strides = [1, 1]} : vector<7x6xf32> to vector<7x1xf32>
    %57 = vector.extract_strided_slice %1 {offsets = [2, 0], sizes = [1, 128], strides = [1, 1]} : vector<6x128xf32> to vector<1x128xf32>
    %58 = vector.broadcast %56 : vector<7x1xf32> to vector<7x128xf32>
    %59 = vector.broadcast %57 : vector<1x128xf32> to vector<7x128xf32>
    %60 = arith.mulf %58, %59 : vector<7x128xf32>
    %61 = arith.addf %55, %60 : vector<7x128xf32>
    %62 = vector.extract_strided_slice %3 {offsets = [0, 3], sizes = [7, 1], strides = [1, 1]} : vector<7x6xf32> to vector<7x1xf32>
    %63 = vector.extract_strided_slice %1 {offsets = [3, 0], sizes = [1, 128], strides = [1, 1]} : vector<6x128xf32> to vector<1x128xf32>
    %64 = vector.broadcast %62 : vector<7x1xf32> to vector<7x128xf32>
    %65 = vector.broadcast %63 : vector<1x128xf32> to vector<7x128xf32>
    %66 = arith.mulf %64, %65 : vector<7x128xf32>
    %67 = arith.addf %61, %66 : vector<7x128xf32>
    %68 = vector.extract_strided_slice %3 {offsets = [0, 4], sizes = [7, 1], strides = [1, 1]} : vector<7x6xf32> to vector<7x1xf32>
    %69 = vector.extract_strided_slice %1 {offsets = [4, 0], sizes = [1, 128], strides = [1, 1]} : vector<6x128xf32> to vector<1x128xf32>
    %70 = vector.broadcast %68 : vector<7x1xf32> to vector<7x128xf32>
    %71 = vector.broadcast %69 : vector<1x128xf32> to vector<7x128xf32>
    %72 = arith.mulf %70, %71 : vector<7x128xf32>
    %73 = arith.addf %67, %72 : vector<7x128xf32>
    %74 = vector.extract_strided_slice %3 {offsets = [0, 5], sizes = [7, 1], strides = [1, 1]} : vector<7x6xf32> to vector<7x1xf32>
    %75 = vector.extract_strided_slice %1 {offsets = [5, 0], sizes = [1, 128], strides = [1, 1]} : vector<6x128xf32> to vector<1x128xf32>
    %76 = vector.broadcast %74 : vector<7x1xf32> to vector<7x128xf32>
    %77 = vector.broadcast %75 : vector<1x128xf32> to vector<7x128xf32>
    %78 = arith.mulf %76, %77 : vector<7x128xf32>
    %79 = arith.addf %73, %78 : vector<7x128xf32>
    %cst = arith.constant 0.000000e+00 : f32
    %80 = vector.broadcast %cst : f32 to vector<7x128xf32>
    %81 = arith.maximumf %79, %80 : vector<7x128xf32>
    %c0_11 = arith.constant 0 : index
    %c0_12 = arith.constant 0 : index
    %82 = vector.load %arg7[%c0_11, %c0_12] : memref<2x1xf32, #tpu.memory_space<vmem>>, vector<2x1xf32>
    %83 = vector.shape_cast %82 : vector<2x1xf32> to vector<2x1xf32>
    %84 = vector.broadcast %83 : vector<2x1xf32> to vector<2x128xf32>
    %85 = vector.extract_strided_slice %4 {offsets = [0, 0], sizes = [2, 1], strides = [1, 1]} : vector<2x7xf32> to vector<2x1xf32>
    %86 = vector.extract_strided_slice %81 {offsets = [0, 0], sizes = [1, 128], strides = [1, 1]} : vector<7x128xf32> to vector<1x128xf32>
    %87 = vector.broadcast %85 : vector<2x1xf32> to vector<2x128xf32>
    %88 = vector.broadcast %86 : vector<1x128xf32> to vector<2x128xf32>
    %89 = arith.mulf %87, %88 : vector<2x128xf32>
    %90 = arith.addf %84, %89 : vector<2x128xf32>
    %91 = vector.extract_strided_slice %4 {offsets = [0, 1], sizes = [2, 1], strides = [1, 1]} : vector<2x7xf32> to vector<2x1xf32>
    %92 = vector.extract_strided_slice %81 {offsets = [1, 0], sizes = [1, 128], strides = [1, 1]} : vector<7x128xf32> to vector<1x128xf32>
    %93 = vector.broadcast %91 : vector<2x1xf32> to vector<2x128xf32>
    %94 = vector.broadcast %92 : vector<1x128xf32> to vector<2x128xf32>
    %95 = arith.mulf %93, %94 : vector<2x128xf32>
    %96 = arith.addf %90, %95 : vector<2x128xf32>
    %97 = vector.extract_strided_slice %4 {offsets = [0, 2], sizes = [2, 1], strides = [1, 1]} : vector<2x7xf32> to vector<2x1xf32>
    %98 = vector.extract_strided_slice %81 {offsets = [2, 0], sizes = [1, 128], strides = [1, 1]} : vector<7x128xf32> to vector<1x128xf32>
    %99 = vector.broadcast %97 : vector<2x1xf32> to vector<2x128xf32>
    %100 = vector.broadcast %98 : vector<1x128xf32> to vector<2x128xf32>
    %101 = arith.mulf %99, %100 : vector<2x128xf32>
    %102 = arith.addf %96, %101 : vector<2x128xf32>
    %103 = vector.extract_strided_slice %4 {offsets = [0, 3], sizes = [2, 1], strides = [1, 1]} : vector<2x7xf32> to vector<2x1xf32>
    %104 = vector.extract_strided_slice %81 {offsets = [3, 0], sizes = [1, 128], strides = [1, 1]} : vector<7x128xf32> to vector<1x128xf32>
    %105 = vector.broadcast %103 : vector<2x1xf32> to vector<2x128xf32>
    %106 = vector.broadcast %104 : vector<1x128xf32> to vector<2x128xf32>
    %107 = arith.mulf %105, %106 : vector<2x128xf32>
    %108 = arith.addf %102, %107 : vector<2x128xf32>
    %109 = vector.extract_strided_slice %4 {offsets = [0, 4], sizes = [2, 1], strides = [1, 1]} : vector<2x7xf32> to vector<2x1xf32>
    %110 = vector.extract_strided_slice %81 {offsets = [4, 0], sizes = [1, 128], strides = [1, 1]} : vector<7x128xf32> to vector<1x128xf32>
    %111 = vector.broadcast %109 : vector<2x1xf32> to vector<2x128xf32>
    %112 = vector.broadcast %110 : vector<1x128xf32> to vector<2x128xf32>
    %113 = arith.mulf %111, %112 : vector<2x128xf32>
    %114 = arith.addf %108, %113 : vector<2x128xf32>
    %115 = vector.extract_strided_slice %4 {offsets = [0, 5], sizes = [2, 1], strides = [1, 1]} : vector<2x7xf32> to vector<2x1xf32>
    %116 = vector.extract_strided_slice %81 {offsets = [5, 0], sizes = [1, 128], strides = [1, 1]} : vector<7x128xf32> to vector<1x128xf32>
    %117 = vector.broadcast %115 : vector<2x1xf32> to vector<2x128xf32>
    %118 = vector.broadcast %116 : vector<1x128xf32> to vector<2x128xf32>
    %119 = arith.mulf %117, %118 : vector<2x128xf32>
    %120 = arith.addf %114, %119 : vector<2x128xf32>
    %121 = vector.extract_strided_slice %4 {offsets = [0, 6], sizes = [2, 1], strides = [1, 1]} : vector<2x7xf32> to vector<2x1xf32>
    %122 = vector.extract_strided_slice %81 {offsets = [6, 0], sizes = [1, 128], strides = [1, 1]} : vector<7x128xf32> to vector<1x128xf32>
    %123 = vector.broadcast %121 : vector<2x1xf32> to vector<2x128xf32>
    %124 = vector.broadcast %122 : vector<1x128xf32> to vector<2x128xf32>
    %125 = arith.mulf %123, %124 : vector<2x128xf32>
    %126 = arith.addf %120, %125 : vector<2x128xf32>
    %c0_13 = arith.constant 0 : index
    %c0_14 = arith.constant 0 : index
    %127 = vector.load %arg8[%c0_13, %c0_14] : memref<2x128xf32, #tpu.memory_space<vmem>>, vector<2x128xf32>
    tpu.vector_store %arg8[%c0_13, %c0_14], %126 {strides = array<i32>} : memref<2x128xf32, #tpu.memory_space<vmem>>, vector<2x128xf32>,
    return
  }
  func.func @transform_0(%arg0: i32) -> (i32, i32) {
    %c0_i32 = arith.constant 0 : i32
    %c0_i32_0 = arith.constant 0 : i32
    return %c0_i32, %arg0 : i32, i32
  }
  func.func @transform_1(%arg0: i32) -> (i32, i32) {
    %c0_i32 = arith.constant 0 : i32
    %c0_i32_0 = arith.constant 0 : i32
    return %c0_i32, %arg0 : i32, i32
  }
  func.func @transform_2(%arg0: i32) -> (i32, i32) {
    %c0_i32 = arith.constant 0 : i32
    %c0_i32_0 = arith.constant 0 : i32
    %c0_i32_1 = arith.constant 0 : i32
    return %c0_i32, %c0_i32_0 : i32, i32
  }
  func.func @transform_3(%arg0: i32) -> (i32, i32) {
    %c0_i32 = arith.constant 0 : i32
    %c0_i32_0 = arith.constant 0 : i32
    %c0_i32_1 = arith.constant 0 : i32
    return %c0_i32, %c0_i32_0 : i32, i32
  }
  func.func @transform_4(%arg0: i32) -> (i32, i32) {
    %c0_i32 = arith.constant 0 : i32
    %c0_i32_0 = arith.constant 0 : i32
    %c0_i32_1 = arith.constant 0 : i32
    return %c0_i32, %c0_i32_0 : i32, i32
  }
  func.func @transform_5(%arg0: i32) -> (i32, i32) {
    %c0_i32 = arith.constant 0 : i32
    %c0_i32_0 = arith.constant 0 : i32
    %c0_i32_1 = arith.constant 0 : i32
    return %c0_i32, %c0_i32_0 : i32, i32
  }
  func.func @transform_6(%arg0: i32) -> (i32, i32) {
    %c0_i32 = arith.constant 0 : i32
    %c0_i32_0 = arith.constant 0 : i32
    %c0_i32_1 = arith.constant 0 : i32
    return %c0_i32, %c0_i32_0 : i32, i32
  }
  func.func @transform_7(%arg0: i32) -> (i32, i32) {
    %c0_i32 = arith.constant 0 : i32
    %c0_i32_0 = arith.constant 0 : i32
    return %c0_i32, %arg0 : i32, i32
  }
}

</mosaic_0001>

<llo_original>
// kernel: tpu_custom_call.1
$region0: #{tpu_custom_call.1}
  #allocation0 [shape = 'u32[]', space=smem, size = 0x4, offset = 0x4, fixed_abs, tag = 'smem constant byte address 0x4 - core index']
  #allocation1 [shape = 'u32[72,128]{1,0:T(1,128)}', space=vmem, size = 0x9000, scoped, tag = 'internal scratch']
  %s0 = inlined_call_operand.hbm [shape: f32[6,256], index: 0, kind: input, shape index: {}]
  %s1 = inlined_call_operand.hbm [shape: f32[6,256], index: 1, kind: input, shape index: {}]
  %s2 = inlined_call_operand.vmem [shape: f32[7,6], index: 2, kind: input, shape index: {}]
  %s3 = inlined_call_operand.hbm [shape: f32[7,6], index: 3, kind: input, shape index: {}]
  %s4 = inlined_call_operand.vmem [shape: f32[7,1], index: 4, kind: input, shape index: {}]
  %s5 = inlined_call_operand.vmem [shape: f32[2,7], index: 5, kind: input, shape index: {}]
  %s6 = inlined_call_operand.vmem [shape: f32[2,1], index: 6, kind: input, shape index: {}]
  %s7 = inlined_call_operand.hbm [shape: f32[2,256], index: 7, kind: output, shape index: {}]
  %s8 = sld [smem:[#allocation0]]
  $region73: #{tpu_custom_call.1} parent=0
    _
  %s10 = ssub.s32 1, %s8
  %s11 = scalar_select 0, %s10, %s8
  $region1: #{tpu_custom_call.1} parent=0
    #allocation2 [shape = 'u8[8192]{0}', space=vmem, size = 0x2000, scoped, tag = 'input window, operand 0']
    #allocation3 [shape = 's32[2]{0}', space=sflag, size = 0x8, scoped, tag = 'scoped memory for tpu_custom_call.1']
    #allocation4 [shape = 's32[2]{0}', space=sflag, size = 0x8, scoped, tag = 'scoped memory for tpu_custom_call.1']
    #allocation5 [shape = 'u8[8192]{0}', space=vmem, size = 0x2000, scoped, tag = 'input window, operand 1']
    #allocation6 [shape = 's32[2]{0}', space=sflag, size = 0x8, scoped, tag = 'scoped memory for tpu_custom_call.1']
    #allocation7 [shape = 'u8[4096]{0}', space=vmem, size = 0x1000, scoped, tag = 'input window, operand 3, single buffered']
    #allocation8 [shape = 'u8[2048]{0}', space=vmem, size = 0x800, scoped, tag = 'output window, operand 0']
    %12 = vsyncpa [#allocation3], 0
    %s13 = scalar_lea.sflag [#allocation3], 1
    %14 = vsyncpa %s13, 0
    %15 = vsyncpa [#allocation6], 0
    %s16 = scalar_lea.sflag [#allocation6], 1
    %17 = vsyncpa %s16, 0
    %18 = vsyncpa [#allocation4], 0
    %s19 = scalar_lea.sflag [#allocation4], 1
    %20 = vsyncpa %s19, 0
    loop: start=0, step=1, limit=4
    $region2: #{tpu_custom_call.1} parent=1 // loop_pre_header
      _
    $region3: #{tpu_custom_call.1} parent=1 // loop_header
      %s22 = sphi 0, %s26
      %p23 = scmp.ge.s32.totalorder %s22, 4
      %s32 = sphi 0, %s34
      %s35 = sphi 0, %s32
      %s36 = sphi 0, %s35
      %s52 = sphi 0, %s36
      %s58 = sphi 0, %s60
      %s61 = sphi 0, %s58
      %s62 = sphi 0, %s61
      %s78 = sphi 0, %s62
      %s82 = sphi 0, %s82
      %s84 = sphi 0, %s82
      %s85 = sphi 0, %s84
      %s99 = sphi 0, %s85
      %s103 = sphi 0, %s103
      %s105 = sphi 0, %s103
      %s106 = sphi 0, %s105
      %s120 = sphi 0, %s106
      %s124 = sphi 0, %s124
      %s126 = sphi 0, %s124
      %s127 = sphi 0, %s126
      %s141 = sphi 0, %s127
      %s145 = sphi 0, %s145
      %s147 = sphi 0, %s145
      %s148 = sphi 0, %s147
      %s162 = sphi 0, %s148
      %s166 = sphi 0, %s166
      %s168 = sphi 0, %s166
      %s169 = sphi 0, %s168
      %s183 = sphi 0, %s169
      %s189 = sphi 0, %s191
      %s192 = sphi 0, %s189
      %s193 = sphi 0, %s192
      %s209 = sphi 0, %s193
    $region4: #{tpu_custom_call.1} parent=1 // loop_header_branch
      %25 = sbr.rel (%p23) target = $region8
    $region5: #{tpu_custom_call.1} parent=1 // loop_body
      %s27 = ssub.s32 %s22, 1
      %s28 = ssub.s32 %s22, 2
      %s29 = sadd.s32 %s22, 1
      %s30 = ssub.s32 %s22, %s29
      %p31 = scmp.eq.s32.totalorder %s30, 0
      %s33 = sadd.s32 %s32, 1
      %s34 = scalar_select %p31, %s32, %s33
      %p37 = pneg %p31
      %p38 = scmp.eq.s32.totalorder %s22, 1
      %p39 = por %p37, %p38
      %p40 = scmp.ne.s32.totalorder %s32, %s35
      %p41 = scmp.eq.s32.totalorder %s22, 0
      %p42 = por %p40, %p41
      %p43 = scmp.ne.s32.totalorder %s32, %s35
      %p44 = scmp.eq.s32.totalorder %s27, 1
      %p45 = por %p43, %p44
      %p46 = scmp.ne.s32.totalorder %s35, %s36
      %p47 = scmp.eq.s32.totalorder %s27, 0
      %p48 = por %p46, %p47
      %p49 = scmp.ne.s32.totalorder %s35, %s36
      %p50 = scmp.eq.s32.totalorder %s28, 1
      %p51 = por %p49, %p50
      %p53 = scmp.ne.s32.totalorder %s36, %s52
      %p54 = scmp.eq.s32.totalorder %s28, 0
      %p55 = por %p53, %p54
      %s56 = ssub.s32 %s22, %s29
      %p57 = scmp.eq.s32.totalorder %s56, 0
      %s59 = sadd.s32 %s58, 1
      %s60 = scalar_select %p57, %s58, %s59
      %p63 = pneg %p57
      %p64 = scmp.eq.s32.totalorder %s22, 1
      %p65 = por %p63, %p64
      %p66 = scmp.ne.s32.totalorder %s58, %s61
      %p67 = scmp.eq.s32.totalorder %s22, 0
      %p68 = por %p66, %p67
      %p69 = scmp.ne.s32.totalorder %s58, %s61
      %p70 = scmp.eq.s32.totalorder %s27, 1
      %p71 = por %p69, %p70
      %p72 = scmp.ne.s32.totalorder %s61, %s62
      %p73 = scmp.eq.s32.totalorder %s27, 0
      %p74 = por %p72, %p73
      %p75 = scmp.ne.s32.totalorder %s61, %s62
      %p76 = scmp.eq.s32.totalorder %s28, 1
      %p77 = por %p75, %p76
      %p79 = scmp.ne.s32.totalorder %s62, %s78
      %p80 = scmp.eq.s32.totalorder %s28, 0
      %p81 = por %p79, %p80
      %s83 = sadd.s32 %s82, 1
      %p86 = scmp.eq.s32.totalorder %s22, 1
      %p87 = scmp.ne.s32.totalorder %s82, %s84
      %p88 = scmp.eq.s32.totalorder %s22, 0
      %p89 = por %p87, %p88
      %p90 = scmp.ne.s32.totalorder %s82, %s84
      %p91 = scmp.eq.s32.totalorder %s27, 1
      %p92 = por %p90, %p91
      %p93 = scmp.ne.s32.totalorder %s84, %s85
      %p94 = scmp.eq.s32.totalorder %s27, 0
      %p95 = por %p93, %p94
      %p96 = scmp.ne.s32.totalorder %s84, %s85
      %p97 = scmp.eq.s32.totalorder %s28, 1
      %p98 = por %p96, %p97
      %p100 = scmp.ne.s32.totalorder %s85, %s99
      %p101 = scmp.eq.s32.totalorder %s28, 0
      %p102 = por %p100, %p101
      %s104 = sadd.s32 %s103, 1
      %p107 = scmp.eq.s32.totalorder %s22, 1
      %p108 = scmp.ne.s32.totalorder %s103, %s105
      %p109 = scmp.eq.s32.totalorder %s22, 0
      %p110 = por %p108, %p109
      %p111 = scmp.ne.s32.totalorder %s103, %s105
      %p112 = scmp.eq.s32.totalorder %s27, 1
      %p113 = por %p111, %p112
      %p114 = scmp.ne.s32.totalorder %s105, %s106
      %p115 = scmp.eq.s32.totalorder %s27, 0
      %p116 = por %p114, %p115
      %p117 = scmp.ne.s32.totalorder %s105, %s106
      %p118 = scmp.eq.s32.totalorder %s28, 1
      %p119 = por %p117, %p118
      %p121 = scmp.ne.s32.totalorder %s106, %s120
      %p122 = scmp.eq.s32.totalorder %s28, 0
      %p123 = por %p121, %p122
      %s125 = sadd.s32 %s124, 1
      %p128 = scmp.eq.s32.totalorder %s22, 1
      %p129 = scmp.ne.s32.totalorder %s124, %s126
      %p130 = scmp.eq.s32.totalorder %s22, 0
      %p131 = por %p129, %p130
      %p132 = scmp.ne.s32.totalorder %s124, %s126
      %p133 = scmp.eq.s32.totalorder %s27, 1
      %p134 = por %p132, %p133
      %p135 = scmp.ne.s32.totalorder %s126, %s127
      %p136 = scmp.eq.s32.totalorder %s27, 0
      %p137 = por %p135, %p136
      %p138 = scmp.ne.s32.totalorder %s126, %s127
      %p139 = scmp.eq.s32.totalorder %s28, 1
      %p140 = por %p138, %p139
      %p142 = scmp.ne.s32.totalorder %s127, %s141
      %p143 = scmp.eq.s32.totalorder %s28, 0
      %p144 = por %p142, %p143
      %s146 = sadd.s32 %s145, 1
      %p149 = scmp.eq.s32.totalorder %s22, 1
      %p150 = scmp.ne.s32.totalorder %s145, %s147
      %p151 = scmp.eq.s32.totalorder %s22, 0
      %p152 = por %p150, %p151
      %p153 = scmp.ne.s32.totalorder %s145, %s147
      %p154 = scmp.eq.s32.totalorder %s27, 1
      %p155 = por %p153, %p154
      %p156 = scmp.ne.s32.totalorder %s147, %s148
      %p157 = scmp.eq.s32.totalorder %s27, 0
      %p158 = por %p156, %p157
      %p159 = scmp.ne.s32.totalorder %s147, %s148
      %p160 = scmp.eq.s32.totalorder %s28, 1
      %p161 = por %p159, %p160
      %p163 = scmp.ne.s32.totalorder %s148, %s162
      %p164 = scmp.eq.s32.totalorder %s28, 0
      %p165 = por %p163, %p164
      %s167 = sadd.s32 %s166, 1
      %p170 = scmp.eq.s32.totalorder %s22, 1
      %p171 = scmp.ne.s32.totalorder %s166, %s168
      %p172 = scmp.eq.s32.totalorder %s22, 0
      %p173 = por %p171, %p172
      %p174 = scmp.ne.s32.totalorder %s166, %s168
      %p175 = scmp.eq.s32.totalorder %s27, 1
      %p176 = por %p174, %p175
      %p177 = scmp.ne.s32.totalorder %s168, %s169
      %p178 = scmp.eq.s32.totalorder %s27, 0
      %p179 = por %p177, %p178
      %p180 = scmp.ne.s32.totalorder %s168, %s169
      %p181 = scmp.eq.s32.totalorder %s28, 1
      %p182 = por %p180, %p181
      %p184 = scmp.ne.s32.totalorder %s169, %s183
      %p185 = scmp.eq.s32.totalorder %s28, 0
      %p186 = por %p184, %p185
      %s187 = ssub.s32 %s22, %s29
      %p188 = scmp.eq.s32.totalorder %s187, 0
      %s190 = sadd.s32 %s189, 1
      %s191 = scalar_select %p188, %s189, %s190
      %p194 = pneg %p188
      %p195 = scmp.eq.s32.totalorder %s22, 1
      %p196 = por %p194, %p195
      %p197 = scmp.ne.s32.totalorder %s189, %s192
      %p198 = scmp.eq.s32.totalorder %s22, 0
      %p199 = por %p197, %p198
      %p200 = scmp.ne.s32.totalorder %s189, %s192
      %p201 = scmp.eq.s32.totalorder %s27, 1
      %p202 = por %p200, %p201
      %p203 = scmp.ne.s32.totalorder %s192, %s193
      %p204 = scmp.eq.s32.totalorder %s27, 0
      %p205 = por %p203, %p204
      %p206 = scmp.ne.s32.totalorder %s192, %s193
      %p207 = scmp.eq.s32.totalorder %s28, 1
      %p208 = por %p206, %p207
      %p210 = scmp.ne.s32.totalorder %s193, %s209
      %p211 = scmp.eq.s32.totalorder %s28, 0
      %p212 = por %p210, %p211
      %p213 = scmp.le.s32.totalorder 1, %s22
      %p214 = scmp.lt.s32.totalorder %s22, 3
      %p215 = pnand %p213, %p214
      %p216 = pneg %p215
      // Predicated region
      $region9: #{tpu_custom_call.1} parent=5 // pred_check
        _
      $region10: #{tpu_custom_call.1} parent=5 // pred_check_branch
        %218 = sbr.rel (%p215) target = $region12
      $region11: #{tpu_custom_call.1} parent=5 // pred_region
        %s219 = ssub.s32 %s22, 1
        // Predicated region
        $region13: #{tpu_custom_call.1} parent=11 // pred_check
          %p220 = pneg %p95
        $region14: #{tpu_custom_call.1} parent=11 // pred_check_branch
          %222 = sbr.rel (%p220) target = $region16
        $region15: #{tpu_custom_call.1} parent=11 // pred_region
          _
        $region16: #{tpu_custom_call.1} parent=11 // pred_fallthru
          _
        // Predicated region
        $region17: #{tpu_custom_call.1} parent=11 // pred_check
          %p223 = pneg %p116
        $region18: #{tpu_custom_call.1} parent=11 // pred_check_branch
          %225 = sbr.rel (%p223) target = $region20
        $region19: #{tpu_custom_call.1} parent=11 // pred_region
          %227 = vsyncadd [#allocation6], 0
          %s229 = sshll.u32 %s3, 4
          %s230 = int_to_ptr.hbm [resolvable:$true] %s229
          %s231 = sshll.u32 [#allocation7], 4
          %s232 = int_to_ptr.vmem [resolvable:$true] %s231
          %234 = dma.hbm_to_vmem [thread:$0]  %s230, 128, %s232, [#allocation6]
        $region20: #{tpu_custom_call.1} parent=11 // pred_fallthru
          _
        // Predicated region
        $region21: #{tpu_custom_call.1} parent=11 // pred_check
          %p235 = pneg %p137
        $region22: #{tpu_custom_call.1} parent=11 // pred_check_branch
          %237 = sbr.rel (%p235) target = $region24
        $region23: #{tpu_custom_call.1} parent=11 // pred_region
          _
        $region24: #{tpu_custom_call.1} parent=11 // pred_fallthru
          _
        // Predicated region
        $region25: #{tpu_custom_call.1} parent=11 // pred_check
          %p238 = pneg %p158
        $region26: #{tpu_custom_call.1} parent=11 // pred_check_branch
          %240 = sbr.rel (%p238) target = $region28
        $region27: #{tpu_custom_call.1} parent=11 // pred_region
          _
        $region28: #{tpu_custom_call.1} parent=11 // pred_fallthru
          _
        // Predicated region
        $region29: #{tpu_custom_call.1} parent=11 // pred_check
          %p241 = pneg %p179
        $region30: #{tpu_custom_call.1} parent=11 // pred_check_branch
          %243 = sbr.rel (%p241) target = $region32
        $region31: #{tpu_custom_call.1} parent=11 // pred_region
          _
        $region32: #{tpu_custom_call.1} parent=11 // pred_fallthru
          _
      $region12: #{tpu_custom_call.1} parent=5 // pred_fallthru
        _
      %p244 = scmp.lt.s32.totalorder %s22, 2
      // Predicated region
      $region33: #{tpu_custom_call.1} parent=5 // pred_check
        %p245 = pneg %p244
      $region34: #{tpu_custom_call.1} parent=5 // pred_check_branch
        %247 = sbr.rel (%p245) target = $region36
      $region35: #{tpu_custom_call.1} parent=5 // pred_region
        // Predicated region
        $region37: #{tpu_custom_call.1} parent=35 // pred_check
          %p248 = pneg %p42
        $region38: #{tpu_custom_call.1} parent=35 // pred_check_branch
          %250 = sbr.rel (%p248) target = $region40
        $region39: #{tpu_custom_call.1} parent=35 // pred_region
          %s251 = sand.u32 %s32, 1
          %s252 = scalar_lea.sflag [#allocation3], %s251
          %s253 = sand.u32 %s32, 1
          %s254 = smul.addr %s253, 8
          %s255 = scalar_lea.vmem [#allocation2], %s254
          %257 = vsyncadd %s252, 0
          %s258 = smul.addr %s22, 8
          %s259 = scalar_lea.hbm %s0, %s258
          %s261 = sshll.u32 %s259, 4
          %s262 = int_to_ptr.hbm [resolvable:$true] %s261
          %s263 = sshll.u32 %s255, 4
          %s264 = int_to_ptr.vmem [resolvable:$true] %s263
          %266 = dma.hbm_to_vmem [thread:$0]  %s262, 128, %s264, %s252
        $region40: #{tpu_custom_call.1} parent=35 // pred_fallthru
          _
        // Predicated region
        $region41: #{tpu_custom_call.1} parent=35 // pred_check
          %p267 = pneg %p68
        $region42: #{tpu_custom_call.1} parent=35 // pred_check_branch
          %269 = sbr.rel (%p267) target = $region44
        $region43: #{tpu_custom_call.1} parent=35 // pred_region
          %s270 = sand.u32 %s22, 1
          %s271 = scalar_lea.sflag [#allocation6], %s270
          %s272 = sand.u32 %s58, 1
          %s273 = smul.addr %s272, 8
          %s274 = scalar_lea.vmem [#allocation5], %s273
          %276 = vsyncadd %s271, 0
          %s277 = smul.addr %s22, 8
          %s278 = scalar_lea.hbm %s1, %s277
          %s280 = sshll.u32 %s278, 4
          %s281 = int_to_ptr.hbm [resolvable:$true] %s280
          %s282 = sshll.u32 %s274, 4
          %s283 = int_to_ptr.vmem [resolvable:$true] %s282
          %285 = dma.hbm_to_vmem [thread:$0]  %s281, 128, %s283, %s271
        $region44: #{tpu_custom_call.1} parent=35 // pred_fallthru
          _
      $region36: #{tpu_custom_call.1} parent=5 // pred_fallthru
        _
      %p286 = scmp.le.s32.totalorder 1, %s22
      %p287 = scmp.lt.s32.totalorder %s22, 3
      %p288 = pnand %p286, %p287
      %p289 = pneg %p288
      // Predicated region
      $region45: #{tpu_custom_call.1} parent=5 // pred_check
        _
      $region46: #{tpu_custom_call.1} parent=5 // pred_check_branch
        %291 = sbr.rel (%p288) target = $region48
      $region47: #{tpu_custom_call.1} parent=5 // pred_region
        %s292 = ssub.s32 %s22, 1
        %s293 = sand.u32 %s35, 1
        %s294 = scalar_lea.sflag [#allocation3], %s293
        %s295 = sand.u32 %s35, 1
        %s296 = smul.addr %s295, 8
        %s297 = scalar_lea.vmem [#allocation2], %s296
        // Predicated region
        $region49: #{tpu_custom_call.1} parent=47 // pred_check
          %p298 = pneg %p48
        $region50: #{tpu_custom_call.1} parent=47 // pred_check_branch
          %300 = sbr.rel (%p298) target = $region52
        $region51: #{tpu_custom_call.1} parent=47 // pred_region
          %302 = dma.done %s294, 128
        $region52: #{tpu_custom_call.1} parent=47 // pred_fallthru
          _
        %s303 = sand.u32 %s27, 1
        %s304 = scalar_lea.sflag [#allocation6], %s303
        %s305 = sand.u32 %s61, 1
        %s306 = smul.addr %s305, 8
        %s307 = scalar_lea.vmem [#allocation5], %s306
        // Predicated region
        $region53: #{tpu_custom_call.1} parent=47 // pred_check
          %p308 = pneg %p74
        $region54: #{tpu_custom_call.1} parent=47 // pred_check_branch
          %310 = sbr.rel (%p308) target = $region56
        $region55: #{tpu_custom_call.1} parent=47 // pred_region
          %312 = dma.done %s304, 128
        $region56: #{tpu_custom_call.1} parent=47 // pred_fallthru
          _
        // Predicated region
        $region57: #{tpu_custom_call.1} parent=47 // pred_check
          %p313 = pneg %p116
        $region58: #{tpu_custom_call.1} parent=47 // pred_check_branch
          %315 = sbr.rel (%p313) target = $region60
        $region59: #{tpu_custom_call.1} parent=47 // pred_region
          %317 = dma.done [#allocation6], 128
        $region60: #{tpu_custom_call.1} parent=47 // pred_fallthru
          _
        %s318 = sand.u32 %s35, 1
        %s319 = scalar_lea.sflag [#allocation3], %s318
        %s320 = sand.u32 %s35, 1
        %s321 = smul.addr %s320, 8
        %s322 = scalar_lea.vmem [#allocation2], %s321
        %p323 = pneg %p48
        %p324 = pneg %p45
        %s325 = sand.u32 %s27, 1
        %s326 = scalar_lea.sflag [#allocation6], %s325
        %s327 = sand.u32 %s61, 1
        %s328 = smul.addr %s327, 8
        %s329 = scalar_lea.vmem [#allocation5], %s328
        %p330 = pneg %p74
        %p331 = pneg %p71
        %p332 = pneg %p95
        %p333 = pneg %p92
        %p334 = pneg %p116
        %p335 = pneg %p113
        %p336 = pneg %p137
        %p337 = pneg %p134
        %p338 = pneg %p158
        %p339 = pneg %p155
        %p340 = pneg %p179
        %p341 = pneg %p176
        %p342 = pneg %p205
        %p343 = pneg %p202
        %s344 = sand.u32 %s192, 1
        %s345 = scalar_lea.sflag [#allocation4], %s344
        %s346 = sand.u32 %s192, 1
        %s347 = smul.addr %s346, 2
        %s348 = scalar_lea.vmem [#allocation8], %s347
        %v349 = vld [vmem:[%s297] sm:$0x3f]
        %v350 = vld [vmem:[%s307] sm:$0x3f]
        %v351 = vld [vmem:[%s2] sm:$0x7f]
        %v352 = vld [vmem:[#allocation7] sm:$0x7f]
        %v353 = vld [vmem:[%s5] sm:$0x3]
        %v354 = vld [vmem:[%s4] sm:$0x7f]
        %356 = vset.pattern.permute.xlu0 0
        %357 = vperm.xlu0 %356, %v354
        %v358 = vpop.permute.xlu0 %357
        %361 = vset.pattern.permute.xlu0 0
        %362 = vperm.xlu0 %361, %v351
        %v363 = vpop.permute.xlu0 %362
        %v365 = vperm.slane %v349, 0
        %v366 = vmul.f32 %v363, %v365
        %v367 = vadd.f32 %v358, %v366
        %368 = vset.pattern.permute.xlu0 1
        %369 = vperm.xlu0 %368, %v351
        %v370 = vpop.permute.xlu0 %369
        %v372 = vperm.slane %v349, 1
        %v373 = vmul.f32 %v370, %v372
        %v374 = vadd.f32 %v367, %v373
        %375 = vset.pattern.permute.xlu0 2
        %376 = vperm.xlu0 %375, %v351
        %v377 = vpop.permute.xlu0 %376
        %v379 = vperm.slane %v349, 2
        %v380 = vmul.f32 %v377, %v379
        %v381 = vadd.f32 %v374, %v380
        %382 = vset.pattern.permute.xlu0 3
        %383 = vperm.xlu0 %382, %v351
        %v384 = vpop.permute.xlu0 %383
        %v386 = vperm.slane %v349, 3
        %v387 = vmul.f32 %v384, %v386
        %v388 = vadd.f32 %v381, %v387
        %389 = vset.pattern.permute.xlu0 4
        %390 = vperm.xlu0 %389, %v351
        %v391 = vpop.permute.xlu0 %390
        %v393 = vperm.slane %v349, 4
        %v394 = vmul.f32 %v391, %v393
        %v395 = vadd.f32 %v388, %v394
        %396 = vset.pattern.permute.xlu0 5
        %397 = vperm.xlu0 %396, %v351
        %v398 = vpop.permute.xlu0 %397
        %v400 = vperm.slane %v349, 5
        %v401 = vmul.f32 %v398, %v400
        %v402 = vadd.f32 %v395, %v401
        %404 = vset.pattern.permute.xlu0 0
        %405 = vperm.xlu0 %404, %v352
        %v406 = vpop.permute.xlu0 %405
        %v408 = vperm.slane %v350, 0
        %v409 = vmul.f32 %v406, %v408
        %v410 = vadd.f32 %v402, %v409
        %411 = vset.pattern.permute.xlu0 1
        %412 = vperm.xlu0 %411, %v352
        %v413 = vpop.permute.xlu0 %412
        %v415 = vperm.slane %v350, 1
        %v416 = vmul.f32 %v413, %v415
        %v417 = vadd.f32 %v410, %v416
        %418 = vset.pattern.permute.xlu0 2
        %419 = vperm.xlu0 %418, %v352
        %v420 = vpop.permute.xlu0 %419
        %v422 = vperm.slane %v350, 2
        %v423 = vmul.f32 %v420, %v422
        %v424 = vadd.f32 %v417, %v423
        %425 = vset.pattern.permute.xlu0 3
        %426 = vperm.xlu0 %425, %v352
        %v427 = vpop.permute.xlu0 %426
        %v429 = vperm.slane %v350, 3
        %v430 = vmul.f32 %v427, %v429
        %v431 = vadd.f32 %v424, %v430
        %432 = vset.pattern.permute.xlu0 4
        %433 = vperm.xlu0 %432, %v352
        %v434 = vpop.permute.xlu0 %433
        %v436 = vperm.slane %v350, 4
        %v437 = vmul.f32 %v434, %v436
        %v438 = vadd.f32 %v431, %v437
        %439 = vset.pattern.permute.xlu0 5
        %440 = vperm.xlu0 %439, %v352
        %v441 = vpop.permute.xlu0 %440
        %v443 = vperm.slane %v350, 5
        %v444 = vmul.f32 %v441, %v443
        %v445 = vadd.f32 %v438, %v444
        %v446 = vmax.f32 %v445, 0.0
        %v447 = vld [vmem:[%s6] sm:$0x3]
        %449 = vset.pattern.permute.xlu0 0
        %450 = vperm.xlu0 %449, %v447
        %v451 = vpop.permute.xlu0 %450
        %454 = vset.pattern.permute.xlu0 0
        %455 = vperm.xlu0 %454, %v353
        %v456 = vpop.permute.xlu0 %455
        %v458 = vperm.slane %v446, 0
        %v459 = vmul.f32 %v456, %v458
        %v460 = vadd.f32 %v451, %v459
        %461 = vset.pattern.permute.xlu0 1
        %462 = vperm.xlu0 %461, %v353
        %v463 = vpop.permute.xlu0 %462
        %v465 = vperm.slane %v446, 1
        %v466 = vmul.f32 %v463, %v465
        %v467 = vadd.f32 %v460, %v466
        %468 = vset.pattern.permute.xlu0 2
        %469 = vperm.xlu0 %468, %v353
        %v470 = vpop.permute.xlu0 %469
        %v472 = vperm.slane %v446, 2
        %v473 = vmul.f32 %v470, %v472
        %v474 = vadd.f32 %v467, %v473
        %475 = vset.pattern.permute.xlu0 3
        %476 = vperm.xlu0 %475, %v353
        %v477 = vpop.permute.xlu0 %476
        %v479 = vperm.slane %v446, 3
        %v480 = vmul.f32 %v477, %v479
        %v481 = vadd.f32 %v474, %v480
        %482 = vset.pattern.permute.xlu0 4
        %483 = vperm.xlu0 %482, %v353
        %v484 = vpop.permute.xlu0 %483
        %v486 = vperm.slane %v446, 4
        %v487 = vmul.f32 %v484, %v486
        %v488 = vadd.f32 %v481, %v487
        %489 = vset.pattern.permute.xlu0 5
        %490 = vperm.xlu0 %489, %v353
        %v491 = vpop.permute.xlu0 %490
        %v493 = vperm.slane %v446, 5
        %v494 = vmul.f32 %v491, %v493
        %v495 = vadd.f32 %v488, %v494
        %496 = vset.pattern.permute.xlu0 6
        %497 = vperm.xlu0 %496, %v353
        %v498 = vpop.permute.xlu0 %497
        %v500 = vperm.slane %v446, 6
        %v501 = vmul.f32 %v498, %v500
        %v502 = vadd.f32 %v495, %v501
        %503 = vst [vmem:[%s348] sm:$0x3] %v502
        %s504 = sand.u32 %s192, 1
        %s505 = scalar_lea.sflag [#allocation4], %s504
        %s506 = sand.u32 %s192, 1
        %s507 = smul.addr %s506, 2
        %s508 = scalar_lea.vmem [#allocation8], %s507
        // Predicated region
        $region61: #{tpu_custom_call.1} parent=47 // pred_check
          %p509 = pneg %p202
        $region62: #{tpu_custom_call.1} parent=47 // pred_check_branch
          %511 = sbr.rel (%p509) target = $region64
        $region63: #{tpu_custom_call.1} parent=47 // pred_region
          %513 = vsyncadd %s505, 0
          %s514 = smul.addr %s27, 2
          %s515 = scalar_lea.hbm %s7, %s514
          %s517 = sshll.u32 %s508, 4
          %s518 = int_to_ptr.vmem [resolvable:$true] %s517
          %s519 = sshll.u32 %s515, 4
          %s520 = int_to_ptr.hbm [resolvable:$true] %s519
          %522 = dma.vmem_to_hbm [thread:$0]  %s518, 32, %s520, %s505
        $region64: #{tpu_custom_call.1} parent=47 // pred_fallthru
          _
      $region48: #{tpu_custom_call.1} parent=5 // pred_fallthru
        _
      %p523 = scmp.le.s32.totalorder 2, %s22
      // Predicated region
      $region65: #{tpu_custom_call.1} parent=5 // pred_check
        %p524 = pneg %p523
      $region66: #{tpu_custom_call.1} parent=5 // pred_check_branch
        %526 = sbr.rel (%p524) target = $region68
      $region67: #{tpu_custom_call.1} parent=5 // pred_region
        %s527 = ssub.s32 %s22, 2
        // Predicated region
        $region69: #{tpu_custom_call.1} parent=67 // pred_check
          %p528 = pneg %p208
        $region70: #{tpu_custom_call.1} parent=67 // pred_check_branch
          %530 = sbr.rel (%p528) target = $region72
        $region71: #{tpu_custom_call.1} parent=67 // pred_region
          %s531 = sand.u32 %s193, 1
          %s532 = scalar_lea.sflag [#allocation4], %s531
          %s533 = sand.u32 %s193, 1
          %s534 = smul.addr %s533, 2
          %s535 = scalar_lea.vmem [#allocation8], %s534
          %537 = dma.done %s532, 32
        $region72: #{tpu_custom_call.1} parent=67 // pred_fallthru
          _
      $region68: #{tpu_custom_call.1} parent=5 // pred_fallthru
        _
    $region6: #{tpu_custom_call.1} parent=1 // loop_footer
      %s26 = sadd.s32 1, %s22
    $region7: #{tpu_custom_call.1} parent=1 // loop_footer_branch
      %21 = sbr.rel target = $region3
    $region8: #{tpu_custom_call.1} parent=1 // loop_exit
      _
    %538 = vsyncpa [#allocation3], 1
    %s539 = scalar_lea.sflag [#allocation3], 1
    %540 = vsyncpa %s539, 1
    %541 = vsyncpa [#allocation6], 1
    %s542 = scalar_lea.sflag [#allocation6], 1
    %543 = vsyncpa %s542, 1
    %544 = vsyncpa [#allocation4], 1
    %s545 = scalar_lea.sflag [#allocation4], 1
    %546 = vsyncpa %s545, 1

</llo_original>
